<compile_context>
chip_gen: v5e
topology: v5e:2x2
jax: 0.10.0
libtpu: 0.0.40
codegen_flags: <defaults>
</compile_context>

<pallas_src>
import numpy as np

import jax
import jax.numpy as jnp
from jax.experimental import pallas as pl
from jax.experimental.pallas import tpu as pltpu


def _round_up(x, m):
    return (x + m - 1) // m * m


# Scalar-prefetch schedule table fields (one int32 row per field, one column
# per flattened grid step).
_F_OUTN, _F_KOFF, _F_NOFF, _F_SLOT, _F_ZERO, _F_COMMIT, _F_WRITE = range(7)
_NFIELDS = 7


# -----------------------------------------------------------------------------
# Fused backsubstitution kernel
# -----------------------------------------------------------------------------
def _fused_backsub_kernel(tbl_ref, c0_ref, pl_ref, pu_ref, out_ref, c_scr, acc):
    """One (layer, n-tile, k-tile) step of the fused backsubstitution chain.

    c_scr holds the running augmented constraints [lower ; -upper], ping-ponged
    between slots across layers.  Each step does
        acc += max(C_k, 0) @ PL_tile + min(C_k, 0) @ PU_tile
    and, once the k-reduction completes, commits acc to the other scratch slot
    (intermediate layers) or to the HBM output (final certify step only).
    """
    t = pl.program_id(0)
    tk = pl_ref.shape[0]
    tn = pl_ref.shape[1]
    kp0 = c0_ref.shape[1]

    # Seed the running constraints exactly once (seed block is VMEM-resident).
    @pl.when(t == 0)
    def _():
        c_scr[0, :, pl.ds(0, kp0)] = c0_ref[...]

    k_off = pl.multiple_of(tbl_ref[_F_KOFF, t], tk)
    n_off = pl.multiple_of(tbl_ref[_F_NOFF, t], tn)
    slot = tbl_ref[_F_SLOT, t]

    @pl.when(tbl_ref[_F_ZERO, t] == 1)
    def _():
        acc[...] = jnp.zeros_like(acc)

    c_blk = c_scr[slot, :, pl.ds(k_off, tk)]          # (R, TK)
    pos = jnp.maximum(c_blk, 0.0)
    neg = jnp.minimum(c_blk, 0.0)
    acc[...] += (
        jnp.dot(pos, pl_ref[...], preferred_element_type=jnp.float32)
        + jnp.dot(neg, pu_ref[...], preferred_element_type=jnp.float32))

    # k-reduction done: hand the new constraints to the next layer ...
    @pl.when(tbl_ref[_F_COMMIT, t] == 1)
    def _():
        c_scr[1 - slot, :, pl.ds(n_off, tn)] = acc[...]

    # ... or, on the final certify step only, to the HBM output.
    @pl.when(tbl_ref[_F_WRITE, t] == 1)
    def _():
        out_ref[...] = acc[...]


def _fused_backsub_impl(c0_l_slope, c0_l_int, c0_u_slope, c0_u_int,
                        layer_transformers, lb0, ub0):
    """Whole DeepPoly backsubstitution chain in one Pallas kernel.

    layer_transformers: list of (lslope, lintercept, uslope, uintercept),
      ordered from the layer nearest the output (first backsub step) down to
      the earliest affine layer.  lb0/ub0: (B, D0) initial interval bounds.
    Returns (lbounds, ubounds), each (B, M).
    """
    f32 = jnp.float32
    M, K0 = c0_l_slope.shape
    B, D0 = lb0.shape
    S = len(layer_transformers) + 1                  # + final certify step

    # ----- Tile size: fewer, fatter steps when the net is wide enough. -------
    aug = [K0 + 1, D0 + 1, B + 1]
    for (ls, _, _, _) in layer_transformers:
        aug.extend([ls.shape[0] + 1, ls.shape[1] + 1])
    max_aug = max(aug)
    TILE = 512 if max_aug >= 384 else (256 if max_aug >= 192 else 128)
    TK = TN = TILE                                   # TK == TN keeps the chain aligned

    # ----- Per-step padded shapes (per-layer padding, no max-width slab). ----
    dims = []
    for (ls, _, _, _) in layer_transformers:
        K, N = ls.shape
        dims.append((_round_up(K + 1, TK), _round_up(N + 1, TN)))
    dims.append((_round_up(D0 + 1, TK), _round_up(B + 1, TN)))   # certify step
    KP0 = _round_up(K0 + 1, TK)
    WMAX = max([KP0] + [d for kp, np_ in dims for d in (kp, np_)])
    R = _round_up(2 * M, 8)                          # [lower ; -upper] rows

    # ----- Seed: rows [0,M) = [lslope | lint]; rows [M,2M) = -[uslope | uint].
    c0 = jnp.zeros((R, KP0), f32)
    c0 = c0.at[:M, :K0].set(c0_l_slope.astype(f32))
    c0 = c0.at[:M, K0].set(c0_l_int.reshape(-1).astype(f32))
    c0 = c0.at[M:2 * M, :K0].set(-c0_u_slope.astype(f32))
    c0 = c0.at[M:2 * M, K0].set(-c0_u_int.reshape(-1).astype(f32))

    # ----- Augmented, per-layer padded P matrices, stored as (TK, TN) tiles in
    #       the exact order the flattened grid visits them (n outer, k inner).
    def tiles(P, Kp, Np):
        nk, nn = Kp // TK, Np // TN
        return P.reshape(nk, TK, nn, TN).transpose(2, 0, 1, 3).reshape(nk * nn, TK, TN)

    pl_tiles, pu_tiles = [], []
    for (ls, li, us, ui), (Kp, Np) in zip(layer_transformers, dims):
        K, N = ls.shape
        PL = jnp.zeros((Kp, Np), f32)
        PL = PL.at[:K, :N].set(ls.astype(f32))
        PL = PL.at[:K, N].set(li.reshape(-1).astype(f32))
        PL = PL.at[K, N].set(1.0)
        PU = jnp.zeros((Kp, Np), f32)
        PU = PU.at[:K, :N].set(us.astype(f32))
        PU = PU.at[:K, N].set(ui.reshape(-1).astype(f32))
        PU = PU.at[K, N].set(1.0)
        pl_tiles.append(tiles(PL, Kp, Np))
        pu_tiles.append(tiles(PU, Kp, Np))

    # Final concretization against the input interval: [lb0^T | *], [ub0^T | *]
    # with a homogeneous 1-row so intercepts pass through unsplit.
    Kp_c, Np_c = dims[-1]
    PLc = jnp.zeros((Kp_c, Np_c), f32)
    PLc = PLc.at[:D0, :B].set(lb0.T.astype(f32))
    PLc = PLc.at[D0, :B].set(1.0)
    PUc = jnp.zeros((Kp_c, Np_c), f32)
    PUc = PUc.at[:D0, :B].set(ub0.T.astype(f32))
    PUc = PUc.at[D0, :B].set(1.0)
    pl_tiles.append(tiles(PLc, Kp_c, Np_c))
    pu_tiles.append(tiles(PUc, Kp_c, Np_c))

    PLT = jnp.concatenate(pl_tiles, axis=0)          # (T, TK, TN)
    PUT = jnp.concatenate(pu_tiles, axis=0)

    # ----- Flattened-grid schedule table (static, scalar-prefetched to SMEM).
    rows = [[] for _ in range(_NFIELDS)]
    for s, (Kp, Np) in enumerate(dims):
        nk, nn = Kp // TK, Np // TN
        last = (s == S - 1)
        for n in range(nn):
            for k in range(nk):
                rows[_F_OUTN].append(n if last else 0)
                rows[_F_KOFF].append(k * TK)
                rows[_F_NOFF].append(n * TN)
                rows[_F_SLOT].append(s % 2)
                rows[_F_ZERO].append(1 if k == 0 else 0)
                rows[_F_COMMIT].append(1 if (k == nk - 1 and not last) else 0)
                rows[_F_WRITE].append(1 if (k == nk - 1 and last) else 0)
    T = len(rows[0])
    assert int(PLT.shape[0]) == T
    tbl = jnp.asarray(np.asarray(rows, dtype=np.int32))
    Np_last = dims[-1][1]

    # ----- VMEM budget: always set the scoped limit (v5e default is only
    #       16 MiB), capped safely below v7x's 64 MiB physical VMEM.
    est = 4 * (2 * 2 * TK * TN      # PL + PU tiles, double-buffered
               + 2 * R * KP0        # resident seed block
               + 2 * R * TN         # output block
               + 2 * R * WMAX       # ping-pong running constraints
               + R * TN)            # f32 reduction accumulator
    vmem_limit = int(min(max(2 * est, 32 << 20), 56 << 20))

    out = pl.pallas_call(
        _fused_backsub_kernel,
        out_shape=jax.ShapeDtypeStruct((R, Np_last), f32),
        grid_spec=pltpu.PrefetchScalarGridSpec(
            num_scalar_prefetch=1,
            grid=(T,),
            in_specs=[
                # Seed constraints: constant index -> DMA'd once, VMEM-resident.
                pl.BlockSpec((R, KP0), lambda t, tbl: (0, 0)),
                # Per-step PL / PU tiles (leading tile dim squeezed away).
                pl.BlockSpec((None, TK, TN), lambda t, tbl: (t, 0, 0)),
                pl.BlockSpec((None, TK, TN), lambda t, tbl: (t, 0, 0)),
            ],
            out_specs=pl.BlockSpec((R, TN), lambda t, tbl: (0, tbl[_F_OUTN, t])),
            scratch_shapes=[
                pltpu.VMEM((2, R, WMAX), f32),   # ping-pong running constraints
                pltpu.VMEM((R, TN), f32),        # reduction accumulator
            ],
        ),
        # The chain is a carried dependency: single "arbitrary" grid axis.
        # (v7x note: intentionally single-TensorCore; scale by batching rows.)
        compiler_params=pltpu.CompilerParams(
            dimension_semantics=("arbitrary",),
            vmem_limit_bytes=vmem_limit,
        ),
    )(tbl, c0, PLT, PUT)

    lbounds = out[:M, :B].T
    ubounds = -out[M:2 * M, :B].T                    # upper rows were negated
    return lbounds, ubounds


_fused_backsub = jax.jit(_fused_backsub_impl)


# -----------------------------------------------------------------------------
# DeepPoly constraint chain (graph glue in Python, all compute in the kernel)
# -----------------------------------------------------------------------------
class DeepPolyConstraints:
    def __init__(self, lbounds, ubounds):
        self.lbounds = lbounds
        self.ubounds = ubounds
        self.previous = None
        self.transformer = None

    @classmethod
    def constraints_from_eps(cls, inputs, eps, clipper):
        lo, hi = clipper
        return cls(jnp.clip(inputs - eps, lo, hi), jnp.clip(inputs + eps, lo, hi))

    @classmethod
    def constraints_from_transformer(cls, previous, lslope, lintercept, uslope, uintercept):
        self = cls.__new__(cls)
        self.lbounds = None
        self.ubounds = None
        self.previous = previous
        self.transformer = (lslope, lintercept, uslope, uintercept)
        return self

    @classmethod
    def constraints_from_flatten(cls, previous, lbounds, ubounds):
        self = cls.__new__(cls)
        self.lbounds = lbounds
        self.ubounds = ubounds
        self.previous = previous
        self.transformer = 'flatten'
        return self

    def backsubstitution(self):
        if self.lbounds is not None and self.ubounds is not None:
            return
        clslope, clintercept, cuslope, cuintercept = self.transformer
        layers = []
        current = self.previous
        while current.transformer is not None:
            if current.transformer == 'flatten':
                current = current.previous
                continue
            layers.append(current.transformer)
            current = current.previous
        # Entire chain (all backsub steps + certification) in one fused kernel.
        self.lbounds, self.ubounds = _fused_backsub(
            clslope, clintercept, cuslope, cuintercept,
            layers, current.lbounds, current.ubounds)


class DeepPolyVerifier:
    """Pallas-backed equivalent of the PyTorch DeepPolyVerifier module."""

    def __init__(self, true_label, num_labels=10):
        W = -jnp.eye(num_labels, dtype=jnp.float32)
        keep = jnp.arange(num_labels) != true_label
        W = W[keep, :]
        W = W.at[:, true_label].set(jnp.ones((num_labels - 1,), dtype=jnp.float32))
        self.W = W
        self.b = jnp.zeros((1, num_labels - 1), dtype=jnp.float32)

    def __call__(self, previous):
        out = DeepPolyConstraints.constraints_from_transformer(
            previous, self.W, self.b, self.W, self.b)
        out.backsubstitution()
        return out


# -----------------------------------------------------------------------------
# Pure-jnp reference (for correctness check)
# -----------------------------------------------------------------------------
def _ref_backsub(chain_transformers, lb0, ub0, W, b):
    clslope, clintercept, cuslope, cuintercept = W, b, W, b
    for (pls, pli, pus, pui) in reversed(chain_transformers):
        clp = jnp.where(clslope > 0, clslope, 0.0)
        cln = jnp.where(clslope < 0, clslope, 0.0)
        cup = jnp.where(cuslope > 0, cuslope, 0.0)
        cun = jnp.where(cuslope < 0, cuslope, 0.0)
        clintercept = pli @ clp.T + pui @ cln.T + clintercept
        cuintercept = pui @ cup.T + pli @ cun.T + cuintercept
        clslope = clp @ pls + cln @ pus
        cuslope = cup @ pus + cun @ pls
    lp = jnp.where(clslope > 0, clslope, 0.0)
    ln = jnp.where(clslope < 0, clslope, 0.0)
    up = jnp.where(cuslope > 0, cuslope, 0.0)
    un = jnp.where(cuslope < 0, cuslope, 0.0)
    lbounds = lb0 @ lp.T + ub0 @ ln.T + clintercept
    ubounds = ub0 @ up.T + lb0 @ un.T + cuintercept
    return lbounds, ubounds


# -----------------------------------------------------------------------------
# Demo
# -----------------------------------------------------------------------------
if __name__ == "__main__":
    key = jax.random.PRNGKey(0)
    k_x, k_w1, k_b1, k_ls2, k_us2, k_li2, k_ui2 = jax.random.split(key, 7)

    num_labels = 10
    true_label = 3
    D0, H1 = 16, 32          # input features, hidden width
    eps = 0.05

    # Initial interval bounds node (transformer is None).
    x = jax.random.uniform(k_x, (1, D0), dtype=jnp.float32)
    init_node = DeepPolyConstraints.constraints_from_eps(x, eps, (0.0, 1.0))

    # Flatten node (skipped during backsubstitution, as in the PyTorch code).
    flat_node = DeepPolyConstraints.constraints_from_flatten(
        init_node, init_node.lbounds, init_node.ubounds)

    # Layer 1: exact affine layer relaxation (lslope == uslope).
    w1 = jax.random.normal(k_w1, (H1, D0), dtype=jnp.float32) * 0.3
    b1 = jax.random.normal(k_b1, (1, H1), dtype=jnp.float32) * 0.1
    layer1 = DeepPolyConstraints.constraints_from_transformer(flat_node, w1, b1, w1, b1)

    # Layer 2: asymmetric relaxation (ReLU-style) with distinct l/u bounds.
    ls2 = jax.random.normal(k_ls2, (num_labels, H1), dtype=jnp.float32) * 0.3
    us2 = ls2 + 0.1 * jnp.abs(jax.random.normal(k_us2, (num_labels, H1), dtype=jnp.float32))
    li2 = jax.random.normal(k_li2, (1, num_labels), dtype=jnp.float32) * 0.1
    ui2 = li2 + 0.05 * jnp.abs(jax.random.normal(k_ui2, (1, num_labels), dtype=jnp.float32))
    layer2 = DeepPolyConstraints.constraints_from_transformer(layer1, ls2, li2, us2, ui2)

    # Verifier forward.
    verifier = DeepPolyVerifier(true_label, num_labels=num_labels)
    out = verifier(layer2)
    lbounds = jax.block_until_ready(out.lbounds)
    ubounds = jax.block_until_ready(out.ubounds)

    # Reference check against a pure-jnp implementation of the same math.
    ref_l, ref_u = _ref_backsub(
        [(w1, b1, w1, b1), (ls2, li2, us2, ui2)],
        init_node.lbounds, init_node.ubounds, verifier.W, verifier.b)

    assert lbounds.shape == (1, num_labels - 1)
    assert ubounds.shape == (1, num_labels - 1)
    assert jnp.allclose(lbounds, ref_l, atol=1e-4, rtol=1e-4)
    assert jnp.allclose(ubounds, ref_u, atol=1e-4, rtol=1e-4)

    print("KERNEL_OK")
</pallas_src>

<mosaic_0001>
module attributes {stable_mosaic.version = 11 : i64} {
  func.func @_fused_backsub_kernel(%arg0: i32, %arg1: memref<7x3xi32, #tpu.memory_space<smem>>, %arg2: memref<24x128xf32, #tpu.memory_space<vmem>>, %arg3: memref<1x128x128xf32, #tpu.memory_space<vmem>>, %arg4: memref<1x128x128xf32, #tpu.memory_space<vmem>>, %arg5: memref<24x128xf32, #tpu.memory_space<vmem>>, %arg6: memref<2x24x128xf32, #tpu.memory_space<vmem>>, %arg7: memref<24x128xf32, #tpu.memory_space<vmem>>) attributes {dimension_semantics = [#tpu.dimension_semantics<arbitrary>], iteration_bounds = array<i64: 3>, scalar_prefetch = 1 : i64, scratch_operands = 2 : i64, tpu.core_type = #tpu.core_type<tc>, window_params = [{pipeline_mode = #tpu.pipeline_mode<synchronous>, transform_indices = @transform_0, window_bounds = array<i64: 24, 128>}, {transform_indices = @transform_1, window_bounds = array<i64: 1, 128, 128>}, {transform_indices = @transform_2, window_bounds = array<i64: 1, 128, 128>}, {transform_indices = @transform_3, window_bounds = array<i64: 24, 128>}]} {
    %c0_i32 = arith.constant 0 : i32
    %0 = arith.cmpi eq, %arg0, %c0_i32 : i32
    %1 = arith.extui %0 : i1 to i32
    %c0_i32_0 = arith.constant 0 : i32
    %2 = arith.cmpi ne, %1, %c0_i32_0 : i32
    scf.if %2 {
      %c0_19 = arith.constant 0 : index
      %c0_20 = arith.constant 0 : index
      %44 = vector.load %arg2[%c0_19, %c0_20] : memref<24x128xf32, #tpu.memory_space<vmem>>, vector<24x128xf32>
      %c0_21 = arith.constant 0 : index
      %c0_22 = arith.constant 0 : index
      %c0_23 = arith.constant 0 : index
      %45 = vector.load %arg6[%c0_21, %c0_22, %c0_23] : memref<2x24x128xf32, #tpu.memory_space<vmem>>, vector<1x24x128xf32>
      %46 = vector.shape_cast %45 : vector<1x24x128xf32> to vector<24x128xf32>
      %47 = vector.shape_cast %44 : vector<24x128xf32> to vector<1x24x128xf32>
      tpu.vector_store %arg6[%c0_21, %c0_22, %c0_23], %47 {strides = array<i32>} : memref<2x24x128xf32, #tpu.memory_space<vmem>>, vector<1x24x128xf32>,
    } else {
    }
    %c1 = arith.constant 1 : index
    %3 = arith.index_cast %arg0 : i32 to index
    %4 = memref.load %arg1[%c1, %3] : memref<7x3xi32, #tpu.memory_space<smem>>
    %5 = tpu.assume_multiple %4, 128 : i32
    %c2 = arith.constant 2 : index
    %6 = arith.index_cast %arg0 : i32 to index
    %7 = memref.load %arg1[%c2, %6] : memref<7x3xi32, #tpu.memory_space<smem>>
    %8 = tpu.assume_multiple %7, 128 : i32
    %c3 = arith.constant 3 : index
    %9 = arith.index_cast %arg0 : i32 to index
    %10 = memref.load %arg1[%c3, %9] : memref<7x3xi32, #tpu.memory_space<smem>>
    %c4 = arith.constant 4 : index
    %11 = arith.index_cast %arg0 : i32 to index
    %12 = memref.load %arg1[%c4, %11] : memref<7x3xi32, #tpu.memory_space<smem>>
    %c1_i32 = arith.constant 1 : i32
    %13 = arith.cmpi eq, %12, %c1_i32 : i32
    %14 = arith.extui %13 : i1 to i32
    %c0_i32_1 = arith.constant 0 : i32
    %15 = arith.cmpi ne, %14, %c0_i32_1 : i32
    scf.if %15 {
      %cst_19 = arith.constant 0.000000e+00 : f32
      %44 = vector.broadcast %cst_19 : f32 to vector<24x128xf32>
      %c0_20 = arith.constant 0 : index
      %c0_21 = arith.constant 0 : index
      %45 = vector.load %arg7[%c0_20, %c0_21] : memref<24x128xf32, #tpu.memory_space<vmem>>, vector<24x128xf32>
      tpu.vector_store %arg7[%c0_20, %c0_21], %44 {strides = array<i32>} : memref<24x128xf32, #tpu.memory_space<vmem>>, vector<24x128xf32>,
    } else {
    }
    %16 = arith.index_cast %10 : i32 to index
    %c0 = arith.constant 0 : index
    %17 = arith.index_cast %5 : i32 to index
    %18 = vector.load %arg6[%16, %c0, %17] : memref<2x24x128xf32, #tpu.memory_space<vmem>>, vector<1x24x128xf32>
    %19 = vector.shape_cast %18 : vector<1x24x128xf32> to vector<24x128xf32>
    %cst = arith.constant 0.000000e+00 : f32
    %20 = vector.broadcast %cst : f32 to vector<24x128xf32>
    %21 = arith.maximumf %19, %20 : vector<24x128xf32>
    %cst_2 = arith.constant 0.000000e+00 : f32
    %22 = vector.broadcast %cst_2 : f32 to vector<24x128xf32>
    %23 = arith.minimumf %19, %22 : vector<24x128xf32>
    %c0_3 = arith.constant 0 : index
    %c0_4 = arith.constant 0 : index
    %24 = vector.load %arg7[%c0_3, %c0_4] : memref<24x128xf32, #tpu.memory_space<vmem>>, vector<24x128xf32>
    %c0_5 = arith.constant 0 : index
    %c0_6 = arith.constant 0 : index
    %c0_7 = arith.constant 0 : index
    %25 = vector.load %arg3[%c0_5, %c0_6, %c0_7] : memref<1x128x128xf32, #tpu.memory_space<vmem>>, vector<1x128x128xf32>
    %26 = vector.shape_cast %25 : vector<1x128x128xf32> to vector<128x128xf32>
    %cst_8 = arith.constant dense<0.000000e+00> : vector<24x128xf32>
    %27 = tpu.matmul %21, %26, %cst_8 {dimension_numbers = #tpu.dot_dimension_numbers<[1], [0], [0], [1], [0, 0, 1, 1], [], []>} : vector<24x128xf32>, vector<128x128xf32>, vector<24x128xf32> -> vector<24x128xf32>
    %c0_9 = arith.constant 0 : index
    %c0_10 = arith.constant 0 : index
    %c0_11 = arith.constant 0 : index
    %28 = vector.load %arg4[%c0_9, %c0_10, %c0_11] : memref<1x128x128xf32, #tpu.memory_space<vmem>>, vector<1x128x128xf32>
    %29 = vector.shape_cast %28 : vector<1x128x128xf32> to vector<128x128xf32>
    %cst_12 = arith.constant dense<0.000000e+00> : vector<24x128xf32>
    %30 = tpu.matmul %23, %29, %cst_12 {dimension_numbers = #tpu.dot_dimension_numbers<[1], [0], [0], [1], [0, 0, 1, 1], [], []>} : vector<24x128xf32>, vector<128x128xf32>, vector<24x128xf32> -> vector<24x128xf32>
    %31 = arith.addf %27, %30 : vector<24x128xf32>
    %32 = arith.addf %24, %31 : vector<24x128xf32>
    %c0_13 = arith.constant 0 : index
    %c0_14 = arith.constant 0 : index
    %33 = vector.load %arg7[%c0_13, %c0_14] : memref<24x128xf32, #tpu.memory_space<vmem>>, vector<24x128xf32>
    tpu.vector_store %arg7[%c0_13, %c0_14], %32 {strides = array<i32>} : memref<24x128xf32, #tpu.memory_space<vmem>>, vector<24x128xf32>,
    %c5 = arith.constant 5 : index
    %34 = arith.index_cast %arg0 : i32 to index
    %35 = memref.load %arg1[%c5, %34] : memref<7x3xi32, #tpu.memory_space<smem>>
    %c1_i32_15 = arith.constant 1 : i32
    %36 = arith.cmpi eq, %35, %c1_i32_15 : i32
    %37 = arith.extui %36 : i1 to i32
    %c0_i32_16 = arith.constant 0 : i32
    %38 = arith.cmpi ne, %37, %c0_i32_16 : i32
    scf.if %38 {
      %c0_19 = arith.constant 0 : index
      %c0_20 = arith.constant 0 : index
      %44 = vector.load %arg7[%c0_19, %c0_20] : memref<24x128xf32, #tpu.memory_space<vmem>>, vector<24x128xf32>
      %c1_i32_21 = arith.constant 1 : i32
      %45 = arith.subi %c1_i32_21, %10 : i32
      %46 = arith.index_cast %45 : i32 to index
      %c0_22 = arith.constant 0 : index
      %47 = arith.index_cast %8 : i32 to index
      %48 = vector.load %arg6[%46, %c0_22, %47] : memref<2x24x128xf32, #tpu.memory_space<vmem>>, vector<1x24x128xf32>
      %49 = vector.shape_cast %48 : vector<1x24x128xf32> to vector<24x128xf32>
      %50 = vector.shape_cast %44 : vector<24x128xf32> to vector<1x24x128xf32>
      tpu.vector_store %arg6[%46, %c0_22, %47], %50 {strides = array<i32>} : memref<2x24x128xf32, #tpu.memory_space<vmem>>, vector<1x24x128xf32>,
    } else {
    }
    %c6 = arith.constant 6 : index
    %39 = arith.index_cast %arg0 : i32 to index
    %40 = memref.load %arg1[%c6, %39] : memref<7x3xi32, #tpu.memory_space<smem>>
    %c1_i32_17 = arith.constant 1 : i32
    %41 = arith.cmpi eq, %40, %c1_i32_17 : i32
    %42 = arith.extui %41 : i1 to i32
    %c0_i32_18 = arith.constant 0 : i32
    %43 = arith.cmpi ne, %42, %c0_i32_18 : i32
    scf.if %43 {
      %c0_19 = arith.constant 0 : index
      %c0_20 = arith.constant 0 : index
      %44 = vector.load %arg7[%c0_19, %c0_20] : memref<24x128xf32, #tpu.memory_space<vmem>>, vector<24x128xf32>
      %c0_21 = arith.constant 0 : index
      %c0_22 = arith.constant 0 : index
      %45 = vector.load %arg5[%c0_21, %c0_22] : memref<24x128xf32, #tpu.memory_space<vmem>>, vector<24x128xf32>
      tpu.vector_store %arg5[%c0_21, %c0_22], %44 {strides = array<i32>} : memref<24x128xf32, #tpu.memory_space<vmem>>, vector<24x128xf32>,
    } else {
    }
    return
  }
  func.func @transform_0(%arg0: i32, %arg1: memref<7x3xi32, #tpu.memory_space<smem>>) -> (i32, i32) {
    %c0_i32 = arith.constant 0 : i32
    %c0_i32_0 = arith.constant 0 : i32
    %c0_i32_1 = arith.constant 0 : i32
    return %c0_i32, %c0_i32_0 : i32, i32
  }
  func.func @transform_1(%arg0: i32, %arg1: memref<7x3xi32, #tpu.memory_space<smem>>) -> (i32, i32, i32) {
    %c0_i32 = arith.constant 0 : i32
    %c0_i32_0 = arith.constant 0 : i32
    %c0_i32_1 = arith.constant 0 : i32
    return %arg0, %c0_i32, %c0_i32_0 : i32, i32, i32
  }
  func.func @transform_2(%arg0: i32, %arg1: memref<7x3xi32, #tpu.memory_space<smem>>) -> (i32, i32, i32) {
    %c0_i32 = arith.constant 0 : i32
    %c0_i32_0 = arith.constant 0 : i32
    %c0_i32_1 = arith.constant 0 : i32
    return %arg0, %c0_i32, %c0_i32_0 : i32, i32, i32
  }
  func.func @transform_3(%arg0: i32, %arg1: memref<7x3xi32, #tpu.memory_space<smem>>) -> (i32, i32) {
    %c0 = arith.constant 0 : index
    %0 = arith.index_cast %arg0 : i32 to index
    %1 = memref.load %arg1[%c0, %0] : memref<7x3xi32, #tpu.memory_space<smem>>
    %c0_i32 = arith.constant 0 : i32
    %c0_i32_0 = arith.constant 0 : i32
    return %c0_i32, %1 : i32, i32
  }
}

</mosaic_0001>

<llo_original>
// kernel: neg.3
$region0: #{neg.3}
  #allocation0 [shape = 's32[1]{0}', space=sflag, size = 0x4, scoped, tag = 'scoped memory for neg.3']
  %s0 = inlined_call_operand.vmem [shape: f32[9,10], index: 0, kind: input, shape index: {}]
  %s1 = inlined_call_operand.vmem [shape: f32[9,10], index: 1, kind: output, shape index: {}]
  %v2 = vld [vmem:[%s0] sm:$0xff]
  %3 = xla_tuple %v2
  %4 = xla_tuple %3
  %v5 = vxor.u32 %v2, 2147483648
  %6 = xla_tuple %v5
  %7 = vst [vmem:[%s1] sm:$0xff] %v5
  %s8 = scalar_lea.vmem %s0, 8
  %v9 = vld [vmem:[%s8] sm:$0xff]
  %10 = xla_tuple %v9
  %11 = xla_tuple %10
  %v12 = vxor.u32 %v9, 2147483648
  %13 = xla_tuple %v12
  %s14 = scalar_lea.vmem %s1, 8
  %15 = vst [vmem:[%s14] sm:$0xff] %v12

// kernel: _fused_backsub_impl.1
$region0: #{_fused_backsub_impl.1}
  #allocation0 [shape = 'u32[]', space=smem, size = 0x4, offset = 0x4, fixed_abs, tag = 'smem constant byte address 0x4 - core index']
  #allocation1 [shape = 'u32[72,128]{1,0:T(1,128)}', space=vmem, size = 0x9000, scoped, tag = 'internal scratch']
  #allocation2 [shape = 'f32[2,24,128]{2,1,0:T(8,128)}', space=vmem, size = 0x6000, scoped, tag = 'scratch operand']
  #allocation3 [shape = 'f32[24,128]{1,0:T(8,128)}', space=vmem, size = 0x3000, scoped, tag = 'scratch operand']
  #allocation4 [shape = 's32[1]{0}', space=sflag, size = 0x4, scoped, tag = 'scoped memory for _fused_backsub_impl.1']
  #allocation5 [shape = 'u8[4096]{0}', space=smem, size = 0x1000, scoped, tag = 'prefetched SMEM operand 0']
  %s0 = inlined_call_operand.vmem [shape: s32[7,3], index: 0, kind: input, shape index: {}]
  %s1 = inlined_call_operand.vmem [shape: f32[24,128], index: 1, kind: input, shape index: {}]
  %s2 = inlined_call_operand.vmem [shape: f32[3,128,128], index: 2, kind: input, shape index: {}]
  %s3 = inlined_call_operand.vmem [shape: f32[3,128,128], index: 3, kind: input, shape index: {}]
  %s4 = inlined_call_operand.vmem [shape: f32[24,128], index: 4, kind: output, shape index: {}]
  %s5 = sld [smem:[#allocation0]]
  $region61: #{_fused_backsub_impl.1} parent=0
    _
  %s7 = ssub.s32 1, %s5
  %s8 = scalar_select 0, %s7, %s5
  %s10 = sshll.u32 %s0, 4
  %s11 = int_to_ptr.vmem [resolvable:$true] %s10
  %13 = dma.vmem_to_smem %s11, 128, [#allocation5], [#allocation4]
  %15 = dma.done [#allocation4], 128
  %16 = sfence
  loop: start=0, step=1, limit=5
  $region2: #{_fused_backsub_impl.1} parent=0 // loop_pre_header
    _
  $region3: #{_fused_backsub_impl.1} parent=0 // loop_header
    %s18 = sphi 0, %s22
    %p19 = scmp.ge.s32.totalorder %s18, 5
    %s26 = sphi 0, %s26
    %s28 = sphi 0, %s26
    %s29 = sphi 0, %s28
    %s43 = sphi 0, %s29
    %s49 = sphi 0, %s51
    %s52 = sphi 0, %s49
    %s53 = sphi 0, %s52
    %s69 = sphi 0, %s53
    %s75 = sphi 0, %s77
    %s78 = sphi 0, %s75
    %s79 = sphi 0, %s78
    %s95 = sphi 0, %s79
    %s103 = sphi 0, %s105
    %s106 = sphi 0, %s103
    %s107 = sphi 0, %s106
    %s123 = sphi 0, %s107
  $region4: #{_fused_backsub_impl.1} parent=0 // loop_header_branch
    %21 = sbr.rel (%p19) target = $region8
  $region5: #{_fused_backsub_impl.1} parent=0 // loop_body
    %s23 = ssub.s32 %s18, 1
    %s24 = ssub.s32 %s18, 2
    %s25 = sadd.s32 %s18, 1
    %s27 = sadd.s32 %s26, 1
    %p30 = scmp.eq.s32.totalorder %s18, 2
    %p31 = scmp.ne.s32.totalorder %s26, %s28
    %p32 = scmp.eq.s32.totalorder %s18, 0
    %p33 = por %p31, %p32
    %p34 = scmp.ne.s32.totalorder %s26, %s28
    %p35 = scmp.eq.s32.totalorder %s23, 2
    %p36 = por %p34, %p35
    %p37 = scmp.ne.s32.totalorder %s28, %s29
    %p38 = scmp.eq.s32.totalorder %s23, 0
    %p39 = por %p37, %p38
    %p40 = scmp.ne.s32.totalorder %s28, %s29
    %p41 = scmp.eq.s32.totalorder %s24, 2
    %p42 = por %p40, %p41
    %p44 = scmp.ne.s32.totalorder %s29, %s43
    %p45 = scmp.eq.s32.totalorder %s24, 0
    %p46 = por %p44, %p45
    %s47 = ssub.s32 %s18, %s25
    %p48 = scmp.eq.s32.totalorder %s47, 0
    %s50 = sadd.s32 %s49, 1
    %s51 = scalar_select %p48, %s49, %s50
    %p54 = pneg %p48
    %p55 = scmp.eq.s32.totalorder %s18, 2
    %p56 = por %p54, %p55
    %p57 = scmp.ne.s32.totalorder %s49, %s52
    %p58 = scmp.eq.s32.totalorder %s18, 0
    %p59 = por %p57, %p58
    %p60 = scmp.ne.s32.totalorder %s49, %s52
    %p61 = scmp.eq.s32.totalorder %s23, 2
    %p62 = por %p60, %p61
    %p63 = scmp.ne.s32.totalorder %s52, %s53
    %p64 = scmp.eq.s32.totalorder %s23, 0
    %p65 = por %p63, %p64
    %p66 = scmp.ne.s32.totalorder %s52, %s53
    %p67 = scmp.eq.s32.totalorder %s24, 2
    %p68 = por %p66, %p67
    %p70 = scmp.ne.s32.totalorder %s53, %s69
    %p71 = scmp.eq.s32.totalorder %s24, 0
    %p72 = por %p70, %p71
    %s73 = ssub.s32 %s18, %s25
    %p74 = scmp.eq.s32.totalorder %s73, 0
    %s76 = sadd.s32 %s75, 1
    %s77 = scalar_select %p74, %s75, %s76
    %p80 = pneg %p74
    %p81 = scmp.eq.s32.totalorder %s18, 2
    %p82 = por %p80, %p81
    %p83 = scmp.ne.s32.totalorder %s75, %s78
    %p84 = scmp.eq.s32.totalorder %s18, 0
    %p85 = por %p83, %p84
    %p86 = scmp.ne.s32.totalorder %s75, %s78
    %p87 = scmp.eq.s32.totalorder %s23, 2
    %p88 = por %p86, %p87
    %p89 = scmp.ne.s32.totalorder %s78, %s79
    %p90 = scmp.eq.s32.totalorder %s23, 0
    %p91 = por %p89, %p90
    %p92 = scmp.ne.s32.totalorder %s78, %s79
    %p93 = scmp.eq.s32.totalorder %s24, 2
    %p94 = por %p92, %p93
    %p96 = scmp.ne.s32.totalorder %s79, %s95
    %p97 = scmp.eq.s32.totalorder %s24, 0
    %p98 = por %p96, %p97
    %s99 = sld [smem:[#allocation5 + %s18]]
    %s100 = sld [smem:[#allocation5 + %s25]]
    %s101 = ssub.s32 %s99, %s100
    %p102 = scmp.eq.s32.totalorder %s101, 0
    %s104 = sadd.s32 %s103, 1
    %s105 = scalar_select %p102, %s103, %s104
    %p108 = pneg %p102
    %p109 = scmp.eq.s32.totalorder %s18, 2
    %p110 = por %p108, %p109
    %p111 = scmp.ne.s32.totalorder %s103, %s106
    %p112 = scmp.eq.s32.totalorder %s18, 0
    %p113 = por %p111, %p112
    %p114 = scmp.ne.s32.totalorder %s103, %s106
    %p115 = scmp.eq.s32.totalorder %s23, 2
    %p116 = por %p114, %p115
    %p117 = scmp.ne.s32.totalorder %s106, %s107
    %p118 = scmp.eq.s32.totalorder %s23, 0
    %p119 = por %p117, %p118
    %p120 = scmp.ne.s32.totalorder %s106, %s107
    %p121 = scmp.eq.s32.totalorder %s24, 2
    %p122 = por %p120, %p121
    %p124 = scmp.ne.s32.totalorder %s107, %s123
    %p125 = scmp.eq.s32.totalorder %s24, 0
    %p126 = por %p124, %p125
    %p127 = scmp.le.s32.totalorder 1, %s18
    %p128 = scmp.lt.s32.totalorder %s18, 4
    %p129 = pnand %p127, %p128
    %p130 = pneg %p129
    // Predicated region
    $region9: #{_fused_backsub_impl.1} parent=5 // pred_check
      _
    $region10: #{_fused_backsub_impl.1} parent=5 // pred_check_branch
      %132 = sbr.rel (%p129) target = $region12
    $region11: #{_fused_backsub_impl.1} parent=5 // pred_region
      %s133 = ssub.s32 %s18, 1
      // Predicated region
      $region13: #{_fused_backsub_impl.1} parent=11 // pred_check
        %p134 = pneg %p39
      $region14: #{_fused_backsub_impl.1} parent=11 // pred_check_branch
        %136 = sbr.rel (%p134) target = $region16
      $region15: #{_fused_backsub_impl.1} parent=11 // pred_region
        _
      $region16: #{_fused_backsub_impl.1} parent=11 // pred_fallthru
        _
    $region12: #{_fused_backsub_impl.1} parent=5 // pred_fallthru
      _
    %p137 = scmp.lt.s32.totalorder %s18, 3
    // Predicated region
    $region17: #{_fused_backsub_impl.1} parent=5 // pred_check
      %p138 = pneg %p137
    $region18: #{_fused_backsub_impl.1} parent=5 // pred_check_branch
      %140 = sbr.rel (%p138) target = $region20
    $region19: #{_fused_backsub_impl.1} parent=5 // pred_region
      // Predicated region
      $region21: #{_fused_backsub_impl.1} parent=19 // pred_check
        %p141 = pneg %p59
      $region22: #{_fused_backsub_impl.1} parent=19 // pred_check_branch
        %143 = sbr.rel (%p141) target = $region24
      $region23: #{_fused_backsub_impl.1} parent=19 // pred_region
        %p144 = scmp.lt.s32.totalorder %s18, 2
        %s145 = scalar_select %p144, %s18, 2
        %s146 = smul.addr %s145, 16
        %s147 = smul.addr %s146, 8
        %s148 = scalar_lea.vmem %s2, %s147
      $region24: #{_fused_backsub_impl.1} parent=19 // pred_fallthru
        _
      // Predicated region
      $region25: #{_fused_backsub_impl.1} parent=19 // pred_check
        %p149 = pneg %p85
      $region26: #{_fused_backsub_impl.1} parent=19 // pred_check_branch
        %151 = sbr.rel (%p149) target = $region28
      $region27: #{_fused_backsub_impl.1} parent=19 // pred_region
        %p152 = scmp.lt.s32.totalorder %s18, 2
        %s153 = scalar_select %p152, %s18, 2
        %s154 = smul.addr %s153, 16
        %s155 = smul.addr %s154, 8
        %s156 = scalar_lea.vmem %s3, %s155
      $region28: #{_fused_backsub_impl.1} parent=19 // pred_fallthru
        _
    $region20: #{_fused_backsub_impl.1} parent=5 // pred_fallthru
      _
    %p157 = scmp.le.s32.totalorder 1, %s18
    %p158 = scmp.lt.s32.totalorder %s18, 4
    %p159 = pnand %p157, %p158
    %p160 = pneg %p159
    // Predicated region
    $region29: #{_fused_backsub_impl.1} parent=5 // pred_check
      _
    $region30: #{_fused_backsub_impl.1} parent=5 // pred_check_branch
      %162 = sbr.rel (%p159) target = $region32
    $region31: #{_fused_backsub_impl.1} parent=5 // pred_region
      %s163 = ssub.s32 %s18, 1
      %p164 = pneg %p39
      %p165 = pneg %p36
      %p166 = scmp.lt.s32.totalorder %s23, 2
      %s167 = scalar_select %p166, %s23, 2
      %s168 = smul.addr %s167, 16
      %s169 = smul.addr %s168, 8
      %s170 = scalar_lea.vmem %s2, %s169
      %p171 = pneg %p65
      %p172 = pneg %p62
      %p173 = scmp.lt.s32.totalorder %s23, 2
      %s174 = scalar_select %p173, %s23, 2
      %s175 = smul.addr %s174, 16
      %s176 = smul.addr %s175, 8
      %s177 = scalar_lea.vmem %s3, %s176
      %p178 = pneg %p91
      %p179 = pneg %p88
      %p180 = pneg %p119
      %p181 = pneg %p116
      %s182 = sld [smem:[#allocation5 + %s23]]
      %p183 = scmp.lt.s32.totalorder %s182, 0
      %s184 = scalar_select %p183, %s182, 0
      %s185 = smul.addr %s184, 8
      %s186 = scalar_lea.vmem %s4, %s185
      %p187 = scmp.lt.s32.totalorder %s23, 2
      %s188 = scalar_select %p187, %s23, 2
      %s189 = smul.addr %s188, 16
      %s190 = smul.addr %s189, 8
      %s191 = scalar_lea.vmem %s2, %s190
      %p192 = scmp.lt.s32.totalorder %s23, 2
      %s193 = scalar_select %p192, %s23, 2
      %s194 = smul.addr %s193, 16
      %s195 = smul.addr %s194, 8
      %s196 = scalar_lea.vmem %s3, %s195
      %s197 = sld [smem:[#allocation5 + %s23]]
      %p198 = scmp.lt.s32.totalorder %s197, 0
      %s199 = scalar_select %p198, %s197, 0
      %s200 = smul.addr %s199, 8
      %s201 = scalar_lea.vmem %s4, %s200
      %s202 = sld [smem:[#allocation5 + %s23]]
      %p203 = scmp.eq.s32.totalorder %s23, 0
      // Predicated region
      $region33: #{_fused_backsub_impl.1} parent=31 // pred_check
        %p204 = pneg %p203
      $region34: #{_fused_backsub_impl.1} parent=31 // pred_check_branch
        %206 = sbr.rel (%p204) target = $region36
      $region35: #{_fused_backsub_impl.1} parent=31 // pred_region
        %v207 = vld [vmem:[%s1] sm:$0xff]
        %v208 = vld [vmem:[%s1 + $0x8] sm:$0xff]
        %v209 = vld [vmem:[%s1 + $0x10] sm:$0xff]
        %210 = vst [vmem:[#allocation2] sm:$0xff] %v207
        %211 = vst [vmem:[#allocation2 + $0x8] sm:$0xff] %v208
        %212 = vst [vmem:[#allocation2 + $0x10] sm:$0xff] %v209
      $region36: #{_fused_backsub_impl.1} parent=31 // pred_fallthru
        _
      %s213 = sshra.s32 %s23, 7
      %s214 = sand.u32 %s23, 127
      %s215 = sadd.s32 %s213, 1
      %s216 = smul.u32 %s215, 128
      %s217 = sshra.s32 %s23, 7
      %s218 = sand.u32 %s23, 127
      %s219 = sadd.s32 %s216, %s218
      %s220 = sld [smem:[#allocation5 + %s219]]
      %s221 = sadd.s32 %s213, 2
      %s222 = smul.u32 %s221, 128
      %s223 = sadd.s32 %s222, %s218
      %s224 = sld [smem:[#allocation5 + %s223]]
      %s225 = sadd.s32 %s213, 3
      %s226 = smul.u32 %s225, 128
      %s227 = sadd.s32 %s226, %s218
      %s228 = sld [smem:[#allocation5 + %s227]]
      %s229 = sadd.s32 %s213, 4
      %s230 = smul.u32 %s229, 128
      %s231 = sadd.s32 %s230, %s218
      %s232 = sld [smem:[#allocation5 + %s231]]
      %p233 = scmp.eq.s32.totalorder %s232, 1
      // Predicated region
      $region37: #{_fused_backsub_impl.1} parent=31 // pred_check
        %p234 = pneg %p233
      $region38: #{_fused_backsub_impl.1} parent=31 // pred_check_branch
        %236 = sbr.rel (%p234) target = $region40
      $region39: #{_fused_backsub_impl.1} parent=31 // pred_region
        %237 = vst [vmem:[#allocation3] sm:$0xff] 0.0
        %238 = vst [vmem:[#allocation3 + $0x8] sm:$0xff] 0.0
        %239 = vst [vmem:[#allocation3 + $0x10] sm:$0xff] 0.0
      $region40: #{_fused_backsub_impl.1} parent=31 // pred_fallthru
        _
      %s240 = sshra.s32 %s220, 7
      %s241 = sand.u32 %s220, 127
      %s242 = smul.u32 %s228, 24
      %s243 = sadd.s32 %s240, %s242
      %s244 = scalar_lea.vmem [#allocation2], %s243
      %v245 = vld [vmem:[%s244] sm:$0xff]
      %v246 = vld [vmem:[%s244 + $0x8] sm:$0xff]
      %v247 = vld [vmem:[%s244 + $0x10] sm:$0xff]
      %v248 = vmax.f32 %v245, 0.0
      %v249 = vmax.f32 %v246, 0.0
      %v250 = vmax.f32 %v247, 0.0
      %v251 = vmin.f32 %v245, 0.0
      %v252 = vmin.f32 %v246, 0.0
      %v253 = vmin.f32 %v247, 0.0
      %v254 = vld [vmem:[#allocation3] sm:$0xff]
      %v255 = vld [vmem:[#allocation3 + $0x8] sm:$0xff]
      %v256 = vld [vmem:[#allocation3 + $0x10] sm:$0xff]
      %v257 = vld [vmem:[%s191] sm:$0xff]
      %v258 = vld [vmem:[%s191 + $0x8] sm:$0xff]
      %v259 = vld [vmem:[%s191 + $0x10] sm:$0xff]
      %v260 = vld [vmem:[%s191 + $0x18] sm:$0xff]
      %v261 = vld [vmem:[%s191 + $0x20] sm:$0xff]
      %v262 = vld [vmem:[%s191 + $0x28] sm:$0xff]
      %v263 = vld [vmem:[%s191 + $0x30] sm:$0xff]
      %v264 = vld [vmem:[%s191 + $0x38] sm:$0xff]
      %v265 = vld [vmem:[%s191 + $0x40] sm:$0xff]
      %v266 = vld [vmem:[%s191 + $0x48] sm:$0xff]
      %v267 = vld [vmem:[%s191 + $0x50] sm:$0xff]
      %v268 = vld [vmem:[%s191 + $0x58] sm:$0xff]
      %v269 = vld [vmem:[%s191 + $0x60] sm:$0xff]
      %v270 = vld [vmem:[%s191 + $0x68] sm:$0xff]
      %v271 = vld [vmem:[%s191 + $0x70] sm:$0xff]
      %v272 = vld [vmem:[%s191 + $0x78] sm:$0xff]
      %v273 = vld [vmem:[%s196] sm:$0xff]
      %v274 = vld [vmem:[%s196 + $0x8] sm:$0xff]
      %v275 = vld [vmem:[%s196 + $0x10] sm:$0xff]
      %v276 = vld [vmem:[%s196 + $0x18] sm:$0xff]
      %v277 = vld [vmem:[%s196 + $0x20] sm:$0xff]
      %v278 = vld [vmem:[%s196 + $0x28] sm:$0xff]
      %v279 = vld [vmem:[%s196 + $0x30] sm:$0xff]
      %v280 = vld [vmem:[%s196 + $0x38] sm:$0xff]
      %v281 = vld [vmem:[%s196 + $0x40] sm:$0xff]
      %v282 = vld [vmem:[%s196 + $0x48] sm:$0xff]
      %v283 = vld [vmem:[%s196 + $0x50] sm:$0xff]
      %v284 = vld [vmem:[%s196 + $0x58] sm:$0xff]
      %v285 = vld [vmem:[%s196 + $0x60] sm:$0xff]
      %v286 = vld [vmem:[%s196 + $0x68] sm:$0xff]
      %v287 = vld [vmem:[%s196 + $0x70] sm:$0xff]
      %v288 = vld [vmem:[%s196 + $0x78] sm:$0xff]
      %289 = vmatpush.msra.mxu0 %v288
      %290 = vmatpush.msra.mxu0 %v287
      %291 = vmatpush.msra.mxu0 %v286
      %292 = vmatpush.msra.mxu0 %v285
      %293 = vmatpush.msra.mxu0 %v284
      %294 = vmatpush.msra.mxu0 %v283
      %295 = vmatpush.msra.mxu0 %v282
      %296 = vmatpush.msra.mxu0 %v281
      %297 = vmatpush.msra.mxu0 %v280
      %298 = vmatpush.msra.mxu0 %v279
      %299 = vmatpush.msra.mxu0 %v278
      %300 = vmatpush.msra.mxu0 %v277
      %301 = vmatpush.msra.mxu0 %v276
      %302 = vmatpush.msra.mxu0 %v275
      %303 = vmatpush.msra.mxu0 %v274
      %304 = vmatpush.msra.mxu0 %v273
      %305 = vmatmul.f32.gmra.mxu0 %v251
      %v306 = vpop.f32.mrf.mxu0
      %v307 = vadd.f32 0.0, %v306
      %308 = vmatmul.f32.gmra.mxu0 %v252
      %v309 = vpop.f32.mrf.mxu0
      %v310 = vadd.f32 0.0, %v309
      %311 = vmatmul.f32.gmra.mxu0 %v253
      %v312 = vpop.f32.mrf.mxu0
      %v313 = vadd.f32 0.0, %v312
      %314 = vdwg.mxu0
      %315 = vmatpush.msra.mxu0 %v272
      %316 = vmatpush.msra.mxu0 %v271
      %317 = vmatpush.msra.mxu0 %v270
      %318 = vmatpush.msra.mxu0 %v269
      %319 = vmatpush.msra.mxu0 %v268
      %320 = vmatpush.msra.mxu0 %v267
      %321 = vmatpush.msra.mxu0 %v266
      %322 = vmatpush.msra.mxu0 %v265
      %323 = vmatpush.msra.mxu0 %v264
      %324 = vmatpush.msra.mxu0 %v263
      %325 = vmatpush.msra.mxu0 %v262
      %326 = vmatpush.msra.mxu0 %v261
      %327 = vmatpush.msra.mxu0 %v260
      %328 = vmatpush.msra.mxu0 %v259
      %329 = vmatpush.msra.mxu0 %v258
      %330 = vmatpush.msra.mxu0 %v257
      %331 = vmatmul.f32.gmra.mxu0 %v248
      %v332 = vpop.f32.mrf.mxu0
      %v333 = vadd.f32 %v307, %v332
      %334 = vmatmul.f32.gmra.mxu0 %v249
      %v335 = vpop.f32.mrf.mxu0
      %v336 = vadd.f32 %v310, %v335
      %337 = vmatmul.f32.gmra.mxu0 %v250
      %v338 = vpop.f32.mrf.mxu0
      %v339 = vadd.f32 %v313, %v338
      %340 = vdwg.mxu0
      %v341 = vadd.f32 %v254, %v333
      %v342 = vadd.f32 %v255, %v336
      %v343 = vadd.f32 %v256, %v339
      %344 = vst [vmem:[#allocation3] sm:$0xff] %v341
      %345 = vst [vmem:[#allocation3 + $0x8] sm:$0xff] %v342
      %346 = vst [vmem:[#allocation3 + $0x10] sm:$0xff] %v343
      %s347 = sadd.s32 %s213, 5
      %s348 = smul.u32 %s347, 128
      %s349 = sadd.s32 %s348, %s218
      %s350 = sld [smem:[#allocation5 + %s349]]
      %p351 = scmp.eq.s32.totalorder %s350, 1
      // Predicated region
      $region41: #{_fused_backsub_impl.1} parent=31 // pred_check
        %p352 = pneg %p351
      $region42: #{_fused_backsub_impl.1} parent=31 // pred_check_branch
        %354 = sbr.rel (%p352) target = $region44
      $region43: #{_fused_backsub_impl.1} parent=31 // pred_region
        %v355 = vld [vmem:[#allocation3] sm:$0xff]
        %v356 = vld [vmem:[#allocation3 + $0x8] sm:$0xff]
        %v357 = vld [vmem:[#allocation3 + $0x10] sm:$0xff]
        %s358 = ssub.s32 1, %s228
        %s359 = sshra.s32 %s224, 7
        %s360 = sand.u32 %s224, 127
        %s361 = smul.u32 %s358, 24
        %s362 = sadd.s32 %s359, %s361
        %s363 = scalar_lea.vmem [#allocation2], %s362
        %364 = vst [vmem:[%s363] sm:$0xff] %v355
        %365 = vst [vmem:[%s363 + $0x8] sm:$0xff] %v356
        %366 = vst [vmem:[%s363 + $0x10] sm:$0xff] %v357
      $region44: #{_fused_backsub_impl.1} parent=31 // pred_fallthru
        _
      %s367 = sadd.s32 %s213, 6
      %s368 = smul.u32 %s367, 128
      %s369 = sadd.s32 %s368, %s218
      %s370 = sld [smem:[#allocation5 + %s369]]
      %p371 = scmp.eq.s32.totalorder %s370, 1
      // Predicated region
      $region45: #{_fused_backsub_impl.1} parent=31 // pred_check
        %p372 = pneg %p371
      $region46: #{_fused_backsub_impl.1} parent=31 // pred_check_branch
        %374 = sbr.rel (%p372) target = $region48
      $region47: #{_fused_backsub_impl.1} parent=31 // pred_region
        %v375 = vld [vmem:[#allocation3] sm:$0xff]
        %v376 = vld [vmem:[#allocation3 + $0x8] sm:$0xff]
        %v377 = vld [vmem:[#allocation3 + $0x10] sm:$0xff]
        %378 = vst [vmem:[%s201] sm:$0xff] %v375
        %379 = vst [vmem:[%s201 + $0x8] sm:$0xff] %v376
        %380 = vst [vmem:[%s201 + $0x10] sm:$0xff] %v377
      $region48: #{_fused_backsub_impl.1} parent=31 // pred_fallthru
        _
      %s381 = sld [smem:[#allocation5 + %s23]]
      %p382 = scmp.lt.s32.totalorder %s381, 0
      %s383 = scalar_select %p382, %s381, 0
      %s384 = smul.addr %s383, 8
      %s385 = scalar_lea.vmem %s4, %s384
      // Predicated region
      $region49: #{_fused_backsub_impl.1} parent=31 // pred_check
        %p386 = pneg %p116
      $region50: #{_fused_backsub_impl.1} parent=31 // pred_check_branch
        %388 = sbr.rel (%p386) target = $region52
      $region51: #{_fused_backsub_impl.1} parent=31 // pred_region
        %s389 = sld [smem:[#allocation5 + %s23]]
      $region52: #{_fused_backsub_impl.1} parent=31 // pred_fallthru
        _
    $region32: #{_fused_backsub_impl.1} parent=5 // pred_fallthru
      _
    %p390 = scmp.le.s32.totalorder 2, %s18
    // Predicated region
    $region53: #{_fused_backsub_impl.1} parent=5 // pred_check
      %p391 = pneg %p390
    $region54: #{_fused_backsub_impl.1} parent=5 // pred_check_branch
      %393 = sbr.rel (%p391) target = $region56
    $region55: #{_fused_backsub_impl.1} parent=5 // pred_region
      %s394 = ssub.s32 %s18, 2
      // Predicated region
      $region57: #{_fused_backsub_impl.1} parent=55 // pred_check
        %p395 = pneg %p122
      $region58: #{_fused_backsub_impl.1} parent=55 // pred_check_branch
        %397 = sbr.rel (%p395) target = $region60
      $region59: #{_fused_backsub_impl.1} parent=55 // pred_region
        %s398 = sld [smem:[#allocation5 + %s24]]
        %p399 = scmp.lt.s32.totalorder %s398, 0
        %s400 = scalar_select %p399, %s398, 0
        %s401 = smul.addr %s400, 8
        %s402 = scalar_lea.vmem %s4, %s401
      $region60: #{_fused_backsub_impl.1} parent=55 // pred_fallthru
        _
    $region56: #{_fused_backsub_impl.1} parent=5 // pred_fallthru
      _
  $region6: #{_fused_backsub_impl.1} parent=0 // loop_footer
    %s22 = sadd.s32 1, %s18
  $region7: #{_fused_backsub_impl.1} parent=0 // loop_footer_branch
    %17 = sbr.rel target = $region3
  $region8: #{_fused_backsub_impl.1} parent=0 // loop_exit
    _

</llo_original>
